<compile_context>
chip_gen: v7x
topology: tpu7x:2x2x1
jax: 0.10.0
libtpu: 0.0.40
codegen_flags: <defaults>
</compile_context>

<pallas_src>
import functools

import numpy as np
import jax
import jax.numpy as jnp
from jax.experimental import pallas as pl
from jax.experimental.pallas import tpu as pltpu


# ---------------------------------------------------------------------------
# Host-side setup (mirrors Sampler.__init__ / init_thresholds exactly).
# Inherently sequential alias-table build -> plain numpy glue, not a kernel.
# ---------------------------------------------------------------------------
def init_thresholds(word_freqs, alpha=0.75):
    vocab_size = len(word_freqs)
    probs = np.array(word_freqs, dtype=np.float32)
    probs = np.power(probs, alpha)
    probs /= probs.sum()
    threshold = np.zeros(shape=(vocab_size,), dtype=np.float32)
    values = np.zeros(shape=(vocab_size * 2,), dtype=np.int32)
    il, ir = 0, 0
    pairs = list(enumerate(probs))
    pairs.sort(key=lambda pair: pair[1])
    for idx, prob in pairs:
        p = prob * vocab_size
        while p > 1 and ir < il:
            values[ir * 2 + 1] = idx
            p -= 1.0 - threshold[ir]
            ir += 1
        threshold[il] = p
        values[il * 2] = idx
        il += 1
    return threshold, values


def pack_tables(threshold_np, values_np):
    """Pad to a multiple of 128 lanes and pack values[2i]/values[2i+1] into int32.

    Returns (thr_tab (n_chunks,128) f32, packed_tab (n_chunks,128) i32).
    """
    vocab_size = threshold_np.shape[0]
    # TODO(synk): for vocab_size > 65536 keep lo/hi as two separate int32
    # tables (two gathers) instead of the 16-bit packing.
    assert vocab_size <= 65536, "lo|hi<<16 packing needs token ids < 2**16"
    vpad = ((vocab_size + 127) // 128) * 128
    n_chunks = vpad // 128

    thr = np.zeros((vpad,), np.float32)
    thr[:vocab_size] = threshold_np.astype(np.float32)

    lo = values_np[0::2].astype(np.int64)          # values[2i]   (left bucket)
    hi = values_np[1::2].astype(np.int64)          # values[2i+1] (right bucket)
    pk64 = lo | (hi << 16)
    pk = np.zeros((vpad,), np.uint32)
    pk[:vocab_size] = pk64.astype(np.uint32)

    return (jnp.asarray(thr.reshape(n_chunks, 128)),
            jnp.asarray(pk.reshape(n_chunks, 128).view(np.int32)))


# ---------------------------------------------------------------------------
# Pallas kernel: fused alias-table lookup via in-vreg lane gather.
# ---------------------------------------------------------------------------
def sampler_kernel(u_ref, thr_ref, pk_ref, out_ref, *, vocab_size, n_chunks):
    # u_ref  : VMEM (BR, BC) float32  uniforms in [0, 1)
    # thr_ref: VMEM (n_chunks, 128) float32  thresholds (lane-padded)
    # pk_ref : VMEM (n_chunks, 128) int32    values[2i] | values[2i+1] << 16
    # out_ref: VMEM (BR, BC) int32   sampled token ids
    br, bc = out_ref.shape
    thr_all = thr_ref[...]                      # (n_chunks, 128)
    pk_all = pk_ref[...]                        # (n_chunks, 128)

    # Process one 128-lane column slab at a time so every gather is the
    # canonical per-vreg lane gather (operand and indices both (BR, 128)).
    for cj in range(bc // 128):
        col = slice(cj * 128, (cj + 1) * 128)
        u = u_ref[:, col]                                       # (BR, 128)
        p = u * jnp.float32(vocab_size)
        # Truncation == floor because p >= 0; clamp guards the u*V == V edge.
        index = jnp.minimum(p.astype(jnp.int32), vocab_size - 1)
        frac = p - index.astype(jnp.float32)

        thr_g = jnp.zeros((br, 128), jnp.float32)
        pk_g = jnp.zeros((br, 128), jnp.int32)
        for c in range(n_chunks):
            local = index - c * 128
            lidx = jnp.clip(local, 0, 127)                      # safe gather idx
            thr_src = jnp.broadcast_to(thr_all[c:c + 1, :], (br, 128))
            pk_src = jnp.broadcast_to(pk_all[c:c + 1, :], (br, 128))
            # In-vreg dynamic lane gather (XLU), not an O(V) select chain.
            thr_c = jnp.take_along_axis(thr_src, lidx, axis=-1)
            pk_c = jnp.take_along_axis(pk_src, lidx, axis=-1)
            if n_chunks == 1:
                thr_g, pk_g = thr_c, pk_c
            else:
                in_chunk = (local >= 0) & (local < 128)
                thr_g = jnp.where(in_chunk, thr_c, thr_g)
                pk_g = jnp.where(in_chunk, pk_c, pk_g)

        left_right = thr_g < frac                               # torch: thr < p - idx
        lo = pk_g & 0xFFFF
        hi = (pk_g >> 16) & 0xFFFF
        out_ref[:, col] = jnp.where(left_right, hi, lo)


def sampler_lookup(u, thr_tab, pk_tab, *, vocab_size,
                   block_rows=256, block_cols=512):
    """Alias-table lookup for pre-drawn uniforms u (R, C), C % 128 == 0."""
    r, c = u.shape
    n_chunks = thr_tab.shape[0]
    assert c % 128 == 0, "last dim must be lane-dense (multiple of 128)"
    block_cols = min(block_cols, c)
    assert block_cols % 128 == 0 and c % block_cols == 0
    block_rows = min(block_rows, r)
    assert block_rows == r or (block_rows % 8 == 0 and r % block_rows == 0)

    grid = (r // block_rows, c // block_cols)

    # VMEM budget: in + out blocks, double-buffered, plus the tiny tables.
    # Keep under the smallest scoped default (v5e: 16 MiB) so defaults work
    # on every generation (v7x has only 64 MiB physical / 32 MiB scoped).
    blk_bytes = block_rows * block_cols * 4
    vmem_est = 2 * 2 * blk_bytes + 2 * 2 * n_chunks * 128 * 4
    assert vmem_est <= 16 * 1024 * 1024, "shrink block_rows/block_cols"

    kern = functools.partial(sampler_kernel,
                             vocab_size=vocab_size, n_chunks=n_chunks)
    return pl.pallas_call(
        kern,
        out_shape=jax.ShapeDtypeStruct((r, c), jnp.int32),
        grid=grid,
        in_specs=[
            pl.BlockSpec((block_rows, block_cols), lambda i, j: (i, j)),  # u
            pl.BlockSpec((n_chunks, 128), lambda i, j: (0, 0)),           # thr
            pl.BlockSpec((n_chunks, 128), lambda i, j: (0, 0)),           # packed
        ],
        out_specs=pl.BlockSpec((block_rows, block_cols), lambda i, j: (i, j)),
        compiler_params=pltpu.CompilerParams(
            dimension_semantics=("parallel", "parallel")),
    )(u, thr_tab, pk_tab)


def sampler_forward(size, key, thr_tab, pk_tab, *, vocab_size,
                    block_rows=256, block_cols=512):
    """Mirrors Sampler.forward(size): draw uniforms, do the alias lookup."""
    u = jax.random.uniform(key, size, dtype=jnp.float32)
    return sampler_lookup(u, thr_tab, pk_tab, vocab_size=vocab_size,
                          block_rows=block_rows, block_cols=block_cols)


if __name__ == "__main__":
    V = 32                  # vocab size (pads to one 128-lane chunk)
    SIZE = (16, 256)        # sampled output shape (rows, lanes)

    key = jax.random.PRNGKey(0)
    kf, ku = jax.random.split(key)

    # Deterministic synthetic word frequencies (the module's __init__ input).
    word_freqs = [int(f) for f in np.asarray(
        jax.random.randint(kf, (V,), minval=1, maxval=1000))]

    thr_np, val_np = init_thresholds(word_freqs, alpha=0.75)
    thr_tab, pk_tab = pack_tables(thr_np, val_np)

    # Kernel path (small blocks -> 2x2 grid so multiple grid steps are exercised).
    u = jax.random.uniform(ku, SIZE, dtype=jnp.float32)
    ids = sampler_lookup(u, thr_tab, pk_tab, vocab_size=V,
                         block_rows=8, block_cols=128)
    ids = np.asarray(jax.block_until_ready(ids))

    # Pure-numpy reference of the torch forward, driven by the same uniforms,
    # using the ORIGINAL (unpacked) threshold/values tables.
    u_np = np.asarray(u)
    p_np = u_np * np.float32(V)
    idx_np = np.minimum(p_np.astype(np.int32), V - 1)
    frac_np = p_np - idx_np.astype(np.float32)
    lr_np = (thr_np[idx_np] < frac_np).astype(np.int32)
    ref_np = val_np[idx_np * 2 + lr_np]

    assert ids.shape == SIZE and ids.dtype == np.int32
    assert np.array_equal(ids, ref_np)
    assert np.all(ids >= 0) and np.all(ids < V)

    # End-to-end forward(size) path (wrapper draws the uniforms itself).
    ids2 = sampler_forward(SIZE, ku, thr_tab, pk_tab, vocab_size=V)
    ids2 = np.asarray(jax.block_until_ready(ids2))
    assert np.array_equal(ids2, ref_np)     # same key -> same uniforms -> same ids

    print("KERNEL_OK")
</pallas_src>

<mosaic_0001>
module attributes {stable_mosaic.version = 11 : i64} {
  func.func @sampler_kernel(%arg0: i32, %arg1: i32, %arg2: memref<8x128xf32, #tpu.memory_space<vmem>>, %arg3: memref<1x128xf32, #tpu.memory_space<vmem>>, %arg4: memref<1x128xi32, #tpu.memory_space<vmem>>, %arg5: memref<8x128xi32, #tpu.memory_space<vmem>>) attributes {dimension_semantics = [#tpu.dimension_semantics<parallel>, #tpu.dimension_semantics<parallel>], iteration_bounds = array<i64: 2, 2>, scalar_prefetch = 0 : i64, scratch_operands = 0 : i64, tpu.core_type = #tpu.core_type<tc>, window_params = [{transform_indices = @transform_0, window_bounds = array<i64: 8, 128>}, {pipeline_mode = #tpu.pipeline_mode<synchronous>, transform_indices = @transform_1, window_bounds = array<i64: 1, 128>}, {pipeline_mode = #tpu.pipeline_mode<synchronous>, transform_indices = @transform_2, window_bounds = array<i64: 1, 128>}, {transform_indices = @transform_3, window_bounds = array<i64: 8, 128>}]} {
    %c0 = arith.constant 0 : index
    %c0_0 = arith.constant 0 : index
    %0 = vector.load %arg3[%c0, %c0_0] : memref<1x128xf32, #tpu.memory_space<vmem>>, vector<1x128xf32>
    %c0_1 = arith.constant 0 : index
    %c0_2 = arith.constant 0 : index
    %1 = vector.load %arg4[%c0_1, %c0_2] : memref<1x128xi32, #tpu.memory_space<vmem>>, vector<1x128xi32>
    %c0_3 = arith.constant 0 : index
    %c0_4 = arith.constant 0 : index
    %2 = vector.load %arg2[%c0_3, %c0_4] : memref<8x128xf32, #tpu.memory_space<vmem>>, vector<8x128xf32>
    %cst = arith.constant 3.200000e+01 : f32
    %3 = vector.broadcast %cst : f32 to vector<8x128xf32>
    %4 = arith.mulf %2, %3 : vector<8x128xf32>
    %5 = arith.fptosi %4 : vector<8x128xf32> to vector<8x128xi32>
    %c31_i32 = arith.constant 31 : i32
    %6 = vector.broadcast %c31_i32 : i32 to vector<8x128xi32>
    %7 = arith.minsi %5, %6 : vector<8x128xi32>
    %8 = arith.sitofp %7 : vector<8x128xi32> to vector<8x128xf32>
    %9 = arith.subf %4, %8 : vector<8x128xf32>
    %c0_i32 = arith.constant 0 : i32
    %10 = vector.broadcast %c0_i32 : i32 to vector<8x128xi32>
    %11 = arith.subi %7, %10 : vector<8x128xi32>
    %c0_i32_5 = arith.constant 0 : i32
    %c127_i32 = arith.constant 127 : i32
    %12 = vector.broadcast %c0_i32_5 : i32 to vector<8x128xi32>
    %13 = arith.maxsi %12, %11 : vector<8x128xi32>
    %14 = vector.broadcast %c127_i32 : i32 to vector<8x128xi32>
    %15 = arith.minsi %14, %13 : vector<8x128xi32>
    %16 = vector.shape_cast %0 : vector<1x128xf32> to vector<1x128xf32>
    %17 = vector.broadcast %16 : vector<1x128xf32> to vector<8x128xf32>
    %18 = vector.shape_cast %1 : vector<1x128xi32> to vector<1x128xi32>
    %19 = vector.broadcast %18 : vector<1x128xi32> to vector<8x128xi32>
    %c0_i32_6 = arith.constant 0 : i32
    %20 = vector.broadcast %c0_i32_6 : i32 to vector<8x128xi32>
    %21 = arith.cmpi slt, %15, %20 : vector<8x128xi32>
    %c128_i32 = arith.constant 128 : i32
    %22 = vector.broadcast %c128_i32 : i32 to vector<8x128xi32>
    %23 = arith.addi %15, %22 : vector<8x128xi32>
    %24 = arith.select %21, %23, %15 : vector<8x128xi1>, vector<8x128xi32>
    %25 = vector.shape_cast %24 : vector<8x128xi32> to vector<8x128x1xi32>
    %26 = vector.shape_cast %25 : vector<8x128x1xi32> to vector<8x128xi32>
    %27 = tpu.dynamic_gather %17[%26] in [1] : vector<8x128xf32>, vector<8x128xi32> -> vector<8x128xf32>
    %c0_i32_7 = arith.constant 0 : i32
    %28 = vector.broadcast %c0_i32_7 : i32 to vector<8x128xi32>
    %29 = arith.cmpi slt, %15, %28 : vector<8x128xi32>
    %c128_i32_8 = arith.constant 128 : i32
    %30 = vector.broadcast %c128_i32_8 : i32 to vector<8x128xi32>
    %31 = arith.addi %15, %30 : vector<8x128xi32>
    %32 = arith.select %29, %31, %15 : vector<8x128xi1>, vector<8x128xi32>
    %33 = vector.shape_cast %32 : vector<8x128xi32> to vector<8x128x1xi32>
    %34 = vector.shape_cast %33 : vector<8x128x1xi32> to vector<8x128xi32>
    %35 = tpu.dynamic_gather %19[%34] in [1] : vector<8x128xi32>, vector<8x128xi32> -> vector<8x128xi32>
    %36 = arith.cmpf olt, %27, %9 : vector<8x128xf32>
    %c65535_i32 = arith.constant 65535 : i32
    %37 = vector.broadcast %c65535_i32 : i32 to vector<8x128xi32>
    %38 = arith.andi %35, %37 : vector<8x128xi32>
    %c16_i32 = arith.constant 16 : i32
    %39 = vector.broadcast %c16_i32 : i32 to vector<8x128xi32>
    %40 = arith.shrsi %35, %39 : vector<8x128xi32>
    %c65535_i32_9 = arith.constant 65535 : i32
    %41 = vector.broadcast %c65535_i32_9 : i32 to vector<8x128xi32>
    %42 = arith.andi %40, %41 : vector<8x128xi32>
    %43 = arith.select %36, %42, %38 : vector<8x128xi1>, vector<8x128xi32>
    %c0_10 = arith.constant 0 : index
    %c0_11 = arith.constant 0 : index
    %44 = vector.load %arg5[%c0_10, %c0_11] : memref<8x128xi32, #tpu.memory_space<vmem>>, vector<8x128xi32>
    tpu.vector_store %arg5[%c0_10, %c0_11], %43 {strides = array<i32>} : memref<8x128xi32, #tpu.memory_space<vmem>>, vector<8x128xi32>,
    return
  }
  func.func @transform_0(%arg0: i32, %arg1: i32) -> (i32, i32) {
    %c0_i32 = arith.constant 0 : i32
    return %arg0, %arg1 : i32, i32
  }
  func.func @transform_1(%arg0: i32, %arg1: i32) -> (i32, i32) {
    %c0_i32 = arith.constant 0 : i32
    %c0_i32_0 = arith.constant 0 : i32
    %c0_i32_1 = arith.constant 0 : i32
    return %c0_i32, %c0_i32_0 : i32, i32
  }
  func.func @transform_2(%arg0: i32, %arg1: i32) -> (i32, i32) {
    %c0_i32 = arith.constant 0 : i32
    %c0_i32_0 = arith.constant 0 : i32
    %c0_i32_1 = arith.constant 0 : i32
    return %c0_i32, %c0_i32_0 : i32, i32
  }
  func.func @transform_3(%arg0: i32, %arg1: i32) -> (i32, i32) {
    %c0_i32 = arith.constant 0 : i32
    return %arg0, %arg1 : i32, i32
  }
}

</mosaic_0001>

<llo_original>
// kernel: tpu_custom_call.1
$region0: #{tpu_custom_call.1}
  #allocation0 [shape = 'u32[]', space=smem, size = 0x4, offset = 0x4, fixed_abs, tag = 'smem constant byte address 0x4 - core index']
  #allocation1 [shape = 'u32[144,128]{1,0:T(1,128)}', space=vmem, size = 0x12000, scoped, tag = 'internal scratch']
  %s0 = inlined_call_operand.hbm [shape: f32[16,256], index: 0, kind: input, shape index: {}]
  %s1 = inlined_call_operand.vmem [shape: f32[1,128], index: 1, kind: input, shape index: {}]
  %s2 = inlined_call_operand.vmem [shape: s32[1,128], index: 2, kind: input, shape index: {}]
  %s3 = inlined_call_operand.hbm [shape: s32[16,256], index: 3, kind: output, shape index: {}]
  %s4 = sld [smem:[#allocation0]]
  $region49: #{tpu_custom_call.1} parent=0
    _
  %s6 = ssub.s32 1, %s4
  %s7 = scalar_select 0, %s6, %s4
  $region1: #{tpu_custom_call.1} parent=0
    #allocation2 [shape = 'u8[8192]{0}', space=vmem, size = 0x2000, scoped, tag = 'input window, operand 0']
    #allocation3 [shape = 's32[2]{0}', space=sflag, size = 0x8, scoped, tag = 'scoped memory for tpu_custom_call.1']
    #allocation4 [shape = 's32[2]{0}', space=sflag, size = 0x8, scoped, tag = 'scoped memory for tpu_custom_call.1']
    #allocation5 [shape = 'u8[8192]{0}', space=vmem, size = 0x2000, scoped, tag = 'output window, operand 0']
    %8 = vsyncpa [#allocation3], 0
    %s9 = scalar_lea.sflag [#allocation3], 1
    %10 = vsyncpa %s9, 0
    %11 = vsyncpa [#allocation4], 0
    %s12 = scalar_lea.sflag [#allocation4], 1
    %13 = vsyncpa %s12, 0
    loop: start=0, step=1, limit=6
    $region2: #{tpu_custom_call.1} parent=1 // loop_pre_header
      _
    $region3: #{tpu_custom_call.1} parent=1 // loop_header
      %s15 = sphi 0, %s19
      %p16 = scmp.ge.s32.totalorder %s15, 6
      %s22 = sphi 0, %s34
      %s23 = sphi 0, %s30
      %s24 = sphi 0, %s22
      %s25 = sphi 0, %s23
      %s26 = sphi 0, %s24
      %s27 = sphi 0, %s25
      %s39 = sphi 0, %s41
      %s42 = sphi 0, %s39
      %s43 = sphi 0, %s42
      %s59 = sphi 0, %s43
      %s63 = sphi 0, %s63
      %s65 = sphi 0, %s63
      %s66 = sphi 0, %s65
      %s80 = sphi 0, %s66
      %s84 = sphi 0, %s84
      %s86 = sphi 0, %s84
      %s87 = sphi 0, %s86
      %s101 = sphi 0, %s87
      %s109 = sphi 0, %s111
      %s112 = sphi 0, %s109
      %s113 = sphi 0, %s112
      %s129 = sphi 0, %s113
    $region4: #{tpu_custom_call.1} parent=1 // loop_header_branch
      %18 = sbr.rel (%p16) target = $region8
    $region5: #{tpu_custom_call.1} parent=1 // loop_body
      %s20 = ssub.s32 %s15, 1
      %s21 = ssub.s32 %s15, 2
      %s28 = sadd.s32 1, %s23
      %p29 = scmp.ge.s32.totalorder %s28, 2
      %s30 = scalar_select %p29, 0, %s28
      %s31 = sadd.s32 1, %s22
      %s32 = scalar_select %p29, %s31, %s22
      %p33 = scmp.ge.s32.totalorder %s32, 2
      %s34 = scalar_select %p33, 0, %s32
      %s35 = ssub.s32 %s22, %s34
      %s36 = ssub.s32 %s23, %s30
      %s37 = sor.u32 %s35, %s36
      %p38 = scmp.eq.s32.totalorder %s37, 0
      %s40 = sadd.s32 %s39, 1
      %s41 = scalar_select %p38, %s39, %s40
      %p44 = pneg %p38
      %p45 = scmp.eq.s32.totalorder %s15, 3
      %p46 = por %p44, %p45
      %p47 = scmp.ne.s32.totalorder %s39, %s42
      %p48 = scmp.eq.s32.totalorder %s15, 0
      %p49 = por %p47, %p48
      %p50 = scmp.ne.s32.totalorder %s39, %s42
      %p51 = scmp.eq.s32.totalorder %s20, 3
      %p52 = por %p50, %p51
      %p53 = scmp.ne.s32.totalorder %s42, %s43
      %p54 = scmp.eq.s32.totalorder %s20, 0
      %p55 = por %p53, %p54
      %p56 = scmp.ne.s32.totalorder %s42, %s43
      %p57 = scmp.eq.s32.totalorder %s21, 3
      %p58 = por %p56, %p57
      %p60 = scmp.ne.s32.totalorder %s43, %s59
      %p61 = scmp.eq.s32.totalorder %s21, 0
      %p62 = por %p60, %p61
      %s64 = sadd.s32 %s63, 1
      %p67 = scmp.eq.s32.totalorder %s15, 3
      %p68 = scmp.ne.s32.totalorder %s63, %s65
      %p69 = scmp.eq.s32.totalorder %s15, 0
      %p70 = por %p68, %p69
      %p71 = scmp.ne.s32.totalorder %s63, %s65
      %p72 = scmp.eq.s32.totalorder %s20, 3
      %p73 = por %p71, %p72
      %p74 = scmp.ne.s32.totalorder %s65, %s66
      %p75 = scmp.eq.s32.totalorder %s20, 0
      %p76 = por %p74, %p75
      %p77 = scmp.ne.s32.totalorder %s65, %s66
      %p78 = scmp.eq.s32.totalorder %s21, 3
      %p79 = por %p77, %p78
      %p81 = scmp.ne.s32.totalorder %s66, %s80
      %p82 = scmp.eq.s32.totalorder %s21, 0
      %p83 = por %p81, %p82
      %s85 = sadd.s32 %s84, 1
      %p88 = scmp.eq.s32.totalorder %s15, 3
      %p89 = scmp.ne.s32.totalorder %s84, %s86
      %p90 = scmp.eq.s32.totalorder %s15, 0
      %p91 = por %p89, %p90
      %p92 = scmp.ne.s32.totalorder %s84, %s86
      %p93 = scmp.eq.s32.totalorder %s20, 3
      %p94 = por %p92, %p93
      %p95 = scmp.ne.s32.totalorder %s86, %s87
      %p96 = scmp.eq.s32.totalorder %s20, 0
      %p97 = por %p95, %p96
      %p98 = scmp.ne.s32.totalorder %s86, %s87
      %p99 = scmp.eq.s32.totalorder %s21, 3
      %p100 = por %p98, %p99
      %p102 = scmp.ne.s32.totalorder %s87, %s101
      %p103 = scmp.eq.s32.totalorder %s21, 0
      %p104 = por %p102, %p103
      %s105 = ssub.s32 %s22, %s34
      %s106 = ssub.s32 %s23, %s30
      %s107 = sor.u32 %s105, %s106
      %p108 = scmp.eq.s32.totalorder %s107, 0
      %s110 = sadd.s32 %s109, 1
      %s111 = scalar_select %p108, %s109, %s110
      %p114 = pneg %p108
      %p115 = scmp.eq.s32.totalorder %s15, 3
      %p116 = por %p114, %p115
      %p117 = scmp.ne.s32.totalorder %s109, %s112
      %p118 = scmp.eq.s32.totalorder %s15, 0
      %p119 = por %p117, %p118
      %p120 = scmp.ne.s32.totalorder %s109, %s112
      %p121 = scmp.eq.s32.totalorder %s20, 3
      %p122 = por %p120, %p121
      %p123 = scmp.ne.s32.totalorder %s112, %s113
      %p124 = scmp.eq.s32.totalorder %s20, 0
      %p125 = por %p123, %p124
      %p126 = scmp.ne.s32.totalorder %s112, %s113
      %p127 = scmp.eq.s32.totalorder %s21, 3
      %p128 = por %p126, %p127
      %p130 = scmp.ne.s32.totalorder %s113, %s129
      %p131 = scmp.eq.s32.totalorder %s21, 0
      %p132 = por %p130, %p131
      %p133 = scmp.le.s32.totalorder 1, %s15
      %p134 = scmp.lt.s32.totalorder %s15, 5
      %p135 = pnand %p133, %p134
      %p136 = pneg %p135
      // Predicated region
      $region9: #{tpu_custom_call.1} parent=5 // pred_check
        _
      $region10: #{tpu_custom_call.1} parent=5 // pred_check_branch
        %138 = sbr.rel (%p135) target = $region12
      $region11: #{tpu_custom_call.1} parent=5 // pred_region
        %s139 = ssub.s32 %s15, 1
        // Predicated region
        $region13: #{tpu_custom_call.1} parent=11 // pred_check
          %p140 = pneg %p76
        $region14: #{tpu_custom_call.1} parent=11 // pred_check_branch
          %142 = sbr.rel (%p140) target = $region16
        $region15: #{tpu_custom_call.1} parent=11 // pred_region
          _
        $region16: #{tpu_custom_call.1} parent=11 // pred_fallthru
          _
        // Predicated region
        $region17: #{tpu_custom_call.1} parent=11 // pred_check
          %p143 = pneg %p97
        $region18: #{tpu_custom_call.1} parent=11 // pred_check_branch
          %145 = sbr.rel (%p143) target = $region20
        $region19: #{tpu_custom_call.1} parent=11 // pred_region
          _
        $region20: #{tpu_custom_call.1} parent=11 // pred_fallthru
          _
      $region12: #{tpu_custom_call.1} parent=5 // pred_fallthru
        _
      %p146 = scmp.lt.s32.totalorder %s15, 4
      // Predicated region
      $region21: #{tpu_custom_call.1} parent=5 // pred_check
        %p147 = pneg %p146
      $region22: #{tpu_custom_call.1} parent=5 // pred_check_branch
        %149 = sbr.rel (%p147) target = $region24
      $region23: #{tpu_custom_call.1} parent=5 // pred_region
        // Predicated region
        $region25: #{tpu_custom_call.1} parent=23 // pred_check
          %p150 = pneg %p49
        $region26: #{tpu_custom_call.1} parent=23 // pred_check_branch
          %152 = sbr.rel (%p150) target = $region28
        $region27: #{tpu_custom_call.1} parent=23 // pred_region
          %s153 = sand.u32 %s39, 1
          %s154 = scalar_lea.sflag [#allocation3], %s153
          %s155 = sand.u32 %s39, 1
          %s156 = smul.addr %s155, 8
          %s157 = scalar_lea.vmem [#allocation2], %s156
          %s159 = ssub.s32 128, 128
          %160 = vsyncadd %s154, %s159
          %s161 = smul.addr %s22, 2
          %s162 = sadd.s32 %s23, %s161
          %s163 = smul.addr %s162, 128
          %s164 = scalar_lea.hbm %s0, %s163
          %s166 = sshll.u32 %s157, 4
          %s167 = int_to_ptr.vmem [resolvable:$true] %s166
          %169 = dma.hbm_to_vmem [thread:$0]  %s164, 128, %s167, %s154
        $region28: #{tpu_custom_call.1} parent=23 // pred_fallthru
          _
      $region24: #{tpu_custom_call.1} parent=5 // pred_fallthru
        _
      %p170 = scmp.le.s32.totalorder 1, %s15
      %p171 = scmp.lt.s32.totalorder %s15, 5
      %p172 = pnand %p170, %p171
      %p173 = pneg %p172
      // Predicated region
      $region29: #{tpu_custom_call.1} parent=5 // pred_check
        _
      $region30: #{tpu_custom_call.1} parent=5 // pred_check_branch
        %175 = sbr.rel (%p172) target = $region32
      $region31: #{tpu_custom_call.1} parent=5 // pred_region
        %s176 = ssub.s32 %s15, 1
        %s177 = sand.u32 %s42, 1
        %s178 = scalar_lea.sflag [#allocation3], %s177
        %s179 = sand.u32 %s42, 1
        %s180 = smul.addr %s179, 8
        %s181 = scalar_lea.vmem [#allocation2], %s180
        // Predicated region
        $region33: #{tpu_custom_call.1} parent=31 // pred_check
          %p182 = pneg %p55
        $region34: #{tpu_custom_call.1} parent=31 // pred_check_branch
          %184 = sbr.rel (%p182) target = $region36
        $region35: #{tpu_custom_call.1} parent=31 // pred_region
          %185 = dma.done %s178, 128
        $region36: #{tpu_custom_call.1} parent=31 // pred_fallthru
          _
        %s186 = sand.u32 %s42, 1
        %s187 = scalar_lea.sflag [#allocation3], %s186
        %s188 = sand.u32 %s42, 1
        %s189 = smul.addr %s188, 8
        %s190 = scalar_lea.vmem [#allocation2], %s189
        %p191 = pneg %p55
        %p192 = pneg %p52
        %p193 = pneg %p76
        %p194 = pneg %p73
        %p195 = pneg %p97
        %p196 = pneg %p94
        %p197 = pneg %p125
        %p198 = pneg %p122
        %s199 = sand.u32 %s112, 1
        %s200 = scalar_lea.sflag [#allocation4], %s199
        %s201 = sand.u32 %s112, 1
        %s202 = smul.addr %s201, 8
        %s203 = scalar_lea.vmem [#allocation5], %s202
        %v204 = vld [vmem:[%s1] sm:$0x1]
        %v205 = vld [vmem:[%s2] sm:$0x1]
        %v206 = vld [vmem:[%s181] sm:$0xff]
        %v207 = vmul.f32 %v206, 32.0
        %v208 = vcvt.f32.s32.to.zero.pseudo %v207
        %vm209 = vcmp.lt.s32.totalorder %v208, 31
        %v210 = vsel %vm209, %v208, 31
        %v211 = vcvt.s32.f32 %v210
        %v212 = vsub.f32 %v207, %v211
        %vm213 = vcmp.gt.s32.totalorder %v210, 0
        %v214 = vsel %vm213, %v210, 0
        %vm215 = vcmp.lt.s32.totalorder %v214, 127
        %v216 = vsel %vm215, %v214, 127
        %v218 = vlaneseq
        %v219 = vshrl.u32 %v218, 7
        %v220 = vsub.s32 0, %v219
        %v221 = vrot.slane %v204, %v220
        %v223 = vlaneseq
        %v224 = vshrl.u32 %v223, 7
        %v225 = vsub.s32 0, %v224
        %v226 = vrot.slane %v205, %v225
        %vm227 = vcmp.lt.s32.totalorder %v216, 0
        %v228 = vadd.s32 %v216, 128
        %v229 = vsel %vm227, %v228, %v216
        %230 = vset.pattern.permute.xlu0 %v229
        %231 = vperm.xlu0 %230, %v221
        %v232 = vpop.permute.xlu0 %231
        %233 = vset.pattern.permute.xlu0 %v229
        %234 = vperm.xlu0 %233, %v226
        %v235 = vpop.permute.xlu0 %234
        %vm236 = vcmp.lt.f32.partialorder %v232, %v212
        %v237 = vand.u32 %v235, 65535
        %v238 = vshra.s32 %v235, 16
        %v239 = vand.u32 %v238, 65535
        %v240 = vsel %vm236, %v239, %v237
        %241 = vst [vmem:[%s203] sm:$0xff] %v240
        %s242 = sand.u32 %s112, 1
        %s243 = scalar_lea.sflag [#allocation4], %s242
        %s244 = sand.u32 %s112, 1
        %s245 = smul.addr %s244, 8
        %s246 = scalar_lea.vmem [#allocation5], %s245
        // Predicated region
        $region37: #{tpu_custom_call.1} parent=31 // pred_check
          %p247 = pneg %p122
        $region38: #{tpu_custom_call.1} parent=31 // pred_check_branch
          %249 = sbr.rel (%p247) target = $region40
        $region39: #{tpu_custom_call.1} parent=31 // pred_region
          %s251 = ssub.s32 128, 128
          %252 = vsyncadd %s243, %s251
          %s253 = smul.addr %s24, 2
          %s254 = sadd.s32 %s25, %s253
          %s255 = smul.addr %s254, 128
          %s256 = scalar_lea.hbm %s3, %s255
          %s258 = sshll.u32 %s246, 4
          %s259 = int_to_ptr.vmem [resolvable:$true] %s258
          %261 = dma.vmem_to_hbm [thread:$0]  %s259, 128, %s256, %s243
        $region40: #{tpu_custom_call.1} parent=31 // pred_fallthru
          _
      $region32: #{tpu_custom_call.1} parent=5 // pred_fallthru
        _
      %p262 = scmp.le.s32.totalorder 2, %s15
      // Predicated region
      $region41: #{tpu_custom_call.1} parent=5 // pred_check
        %p263 = pneg %p262
      $region42: #{tpu_custom_call.1} parent=5 // pred_check_branch
        %265 = sbr.rel (%p263) target = $region44
      $region43: #{tpu_custom_call.1} parent=5 // pred_region
        %s266 = ssub.s32 %s15, 2
        // Predicated region
        $region45: #{tpu_custom_call.1} parent=43 // pred_check
          %p267 = pneg %p128
        $region46: #{tpu_custom_call.1} parent=43 // pred_check_branch
          %269 = sbr.rel (%p267) target = $region48
        $region47: #{tpu_custom_call.1} parent=43 // pred_region
          %s270 = sand.u32 %s113, 1
          %s271 = scalar_lea.sflag [#allocation4], %s270
          %s272 = sand.u32 %s113, 1
          %s273 = smul.addr %s272, 8
          %s274 = scalar_lea.vmem [#allocation5], %s273
          %275 = dma.done %s271, 128
        $region48: #{tpu_custom_call.1} parent=43 // pred_fallthru
          _
      $region44: #{tpu_custom_call.1} parent=5 // pred_fallthru
        _
    $region6: #{tpu_custom_call.1} parent=1 // loop_footer
      %s19 = sadd.s32 1, %s15
    $region7: #{tpu_custom_call.1} parent=1 // loop_footer_branch
      %14 = sbr.rel target = $region3
    $region8: #{tpu_custom_call.1} parent=1 // loop_exit
      _
    %276 = vsyncpa [#allocation3], 1
    %s277 = scalar_lea.sflag [#allocation3], 1
    %278 = vsyncpa %s277, 1
    %279 = vsyncpa [#allocation4], 1
    %s280 = scalar_lea.sflag [#allocation4], 1
    %281 = vsyncpa %s280, 1

</llo_original>
